<compile_context>
chip_gen: v6e
topology: v6e:2x2x1
jax: 0.10.0
libtpu: 0.0.40
codegen_flags: <defaults>
</compile_context>

<pallas_src>
import math

import jax
import jax.numpy as jnp
from jax.experimental import pallas as pl
from jax.experimental.pallas import tpu as pltpu


def _add_pos_kernel(x_ref, pos_ref, o_ref):
    # x_ref/o_ref: (tB, tN), pos_ref: (1, tN) broadcast along sublanes.
    # Promotion + cast ride free VPU slots under the DMA-bound roofline.
    o_ref[...] = (x_ref[...] + pos_ref[...]).astype(o_ref.dtype)


def _target_block_bytes() -> int:
    """Per-block byte target, gated on TPU generation."""
    try:
        kind = jax.devices()[0].device_kind.lower()
    except Exception:
        kind = ""
    # v5e has only a 16 MiB scoped-VMEM default -> stay at ~2 MiB blocks.
    if "v5" in kind:
        return 2 << 20
    # v6e / v7x: 32 MiB scoped default -> ~4 MiB blocks (x/out double-buffered
    # plus pos stays ~16-18 MiB, comfortably inside).
    if "v6" in kind or "v7" in kind:
        return 4 << 20
    return 2 << 20  # conservative default for unknown hardware


def _sublane_align(itemsize: int) -> int:
    """Sublane alignment so packed dtypes fill whole packed vregs."""
    return {4: 8, 2: 16, 1: 32}.get(itemsize, 8)


def _pick_blocks(B: int, N: int, itemsize: int, target_bytes: int,
                 sub_align: int):
    """Pick (tB, tN): ~target_bytes per block, lane-dense, legal.

    Lane tile: full N (always legal) or a multiple of 128.
    Sublane tile: full B (always legal) or a multiple of sub_align (>= 8).
    Ragged edges are handled by the cdiv grid (edge tile masked).
    """
    target_elems = max(128, target_bytes // max(1, itemsize))

    rows_min = min(B, sub_align)
    lane_budget = max(128, target_elems // max(1, rows_min))
    if N <= lane_budget:
        tN = N
    else:
        tN = max(128, (lane_budget // 128) * 128)

    rows = max(1, target_elems // max(1, tN))
    if B <= rows:
        tB = B
    else:
        tB = max(sub_align, (rows // sub_align) * sub_align)
        if tB >= B:
            tB = B
    return tB, tN


def _shrink_tile(t: int, align: int):
    """A smaller legal tile (multiple of `align`), or None if at the floor."""
    if t <= align:
        return None
    cand = max(align, ((t // 2) // align) * align)
    return cand if cand < t else None


def _ensure_min_steps(B, N, tB, tN, itemsize, sub_align,
                      min_steps=4, min_total_bytes=1 << 20):
    """For large arrays, keep >= min_steps grid steps so both TensorCores on
    v7x stream and the pipeline prologue/epilogue amortizes."""
    if B * N * itemsize < min_total_bytes:
        return tB, tN

    def steps(tb, tn):
        return pl.cdiv(B, tb) * pl.cdiv(N, tn)

    while steps(tB, tN) < min_steps:
        new_tN = _shrink_tile(tN, 128)
        if new_tN is not None:
            tN = new_tN
            continue
        new_tB = _shrink_tile(tB, sub_align)
        if new_tB is not None:
            tB = new_tB
            continue
        break
    return tB, tN


def learned_positional_embedding(x: jax.Array, pos: jax.Array,
                                 *, donate_x: bool = False) -> jax.Array:
    """x: (*batch, *pos.shape); returns x + pos (broadcast over batch dims)."""
    nb = x.ndim - pos.ndim
    assert nb >= 0 and pos.shape == x.shape[nb:], (
        f"pos shape {pos.shape} incompatible with x shape {x.shape}"
    )

    out_dtype = jnp.result_type(x.dtype, pos.dtype)
    N = math.prod(pos.shape) if pos.ndim > 0 else 1
    B = math.prod(x.shape[:nb]) if nb > 0 else 1

    # Lane-dense 2D slabs, NO dtype cast here (cast happens in-kernel).
    x2 = x.reshape(B, N)
    pos2 = pos.reshape(1, N)

    out_itemsize = jnp.dtype(out_dtype).itemsize
    sub_align = _sublane_align(out_itemsize)
    tB, tN = _pick_blocks(B, N, out_itemsize, _target_block_bytes(), sub_align)
    tB, tN = _ensure_min_steps(B, N, tB, tN, out_itemsize, sub_align)

    # N outer / B inner: pos's block index (0, n) is constant across the inner
    # batch loop, so the pos tile stays resident (fetched once per n-tile).
    grid = (pl.cdiv(N, tN), pl.cdiv(B, tB))

    bytes_accessed = (
        B * N * jnp.dtype(x.dtype).itemsize      # read x
        + N * jnp.dtype(pos.dtype).itemsize       # read pos (once per n-tile)
        + B * N * out_itemsize                    # write out
    )

    aliases = {}
    if donate_x and x.dtype == out_dtype:
        aliases = {0: 0}

    out2 = pl.pallas_call(
        _add_pos_kernel,
        out_shape=jax.ShapeDtypeStruct((B, N), out_dtype),
        grid=grid,
        in_specs=[
            pl.BlockSpec((tB, tN), lambda n, b: (b, n)),
            pl.BlockSpec((1, tN), lambda n, b: (0, n)),
        ],
        out_specs=pl.BlockSpec((tB, tN), lambda n, b: (b, n)),
        compiler_params=pltpu.CompilerParams(
            dimension_semantics=("parallel", "parallel"),
        ),
        cost_estimate=pl.CostEstimate(
            flops=B * N, transcendentals=0, bytes_accessed=bytes_accessed),
        input_output_aliases=aliases,
    )(x2, pos2)

    return out2.reshape(x.shape)


if __name__ == "__main__":
    # Small shapes consistent with the module: batch=2, seq=8, hidden=32.
    B, S, H = 2, 8, 32
    mean, std = 0.0, 0.01

    key = jax.random.PRNGKey(0)
    k_x, k_pos = jax.random.split(key)

    x = jax.random.normal(k_x, (B, S, H), dtype=jnp.float32)
    # Deterministic synthetic init of the learned parameter (normal(mean, std)).
    pos_embedding_params = mean + std * jax.random.normal(
        k_pos, (S, H), dtype=jnp.float32
    )

    out = learned_positional_embedding(x, pos_embedding_params)
    out = jax.block_until_ready(out)
    ref = x + pos_embedding_params
    assert out.shape == (B, S, H)
    assert jnp.allclose(out, ref, atol=1e-6, rtol=1e-6)

    # Mixed-dtype path (bf16 activations + f32 learned params): the cast now
    # happens inside the kernel; result dtype follows jnp promotion (f32).
    x_bf16 = x.astype(jnp.bfloat16)
    out_mixed = learned_positional_embedding(x_bf16, pos_embedding_params)
    out_mixed = jax.block_until_ready(out_mixed)
    ref_mixed = x_bf16 + pos_embedding_params
    assert out_mixed.dtype == ref_mixed.dtype
    assert jnp.allclose(out_mixed, ref_mixed, atol=1e-6, rtol=1e-6)

    print("KERNEL_OK")
</pallas_src>

<mosaic_0001>
module attributes {stable_mosaic.version = 11 : i64} {
  func.func @_add_pos_kernel(%arg0: i32, %arg1: i32, %arg2: memref<2x256xf32, #tpu.memory_space<vmem>>, %arg3: memref<1x256xf32, #tpu.memory_space<vmem>>, %arg4: memref<2x256xf32, #tpu.memory_space<vmem>>) attributes {dimension_semantics = [#tpu.dimension_semantics<parallel>, #tpu.dimension_semantics<parallel>], iteration_bounds = array<i64: 1, 1>, scalar_prefetch = 0 : i64, scratch_operands = 0 : i64, tpu.core_type = #tpu.core_type<tc>, window_params = [{transform_indices = @transform_0, window_bounds = array<i64: 2, 256>}, {transform_indices = @transform_1, window_bounds = array<i64: 1, 256>}, {transform_indices = @transform_2, window_bounds = array<i64: 2, 256>}]} {
    %c0 = arith.constant 0 : index
    %c0_0 = arith.constant 0 : index
    %0 = vector.load %arg2[%c0, %c0_0] : memref<2x256xf32, #tpu.memory_space<vmem>>, vector<2x256xf32>
    %c0_1 = arith.constant 0 : index
    %c0_2 = arith.constant 0 : index
    %1 = vector.load %arg3[%c0_1, %c0_2] : memref<1x256xf32, #tpu.memory_space<vmem>>, vector<1x256xf32>
    %2 = vector.broadcast %1 : vector<1x256xf32> to vector<2x256xf32>
    %3 = arith.addf %0, %2 : vector<2x256xf32>
    %c0_3 = arith.constant 0 : index
    %c0_4 = arith.constant 0 : index
    %4 = vector.load %arg4[%c0_3, %c0_4] : memref<2x256xf32, #tpu.memory_space<vmem>>, vector<2x256xf32>
    tpu.vector_store %arg4[%c0_3, %c0_4], %3 {strides = array<i32>} : memref<2x256xf32, #tpu.memory_space<vmem>>, vector<2x256xf32>,
    return
  }
  func.func @transform_0(%arg0: i32, %arg1: i32) -> (i32, i32) {
    %c0_i32 = arith.constant 0 : i32
    return %arg1, %arg0 : i32, i32
  }
  func.func @transform_1(%arg0: i32, %arg1: i32) -> (i32, i32) {
    %c0_i32 = arith.constant 0 : i32
    %c0_i32_0 = arith.constant 0 : i32
    return %c0_i32, %arg0 : i32, i32
  }
  func.func @transform_2(%arg0: i32, %arg1: i32) -> (i32, i32) {
    %c0_i32 = arith.constant 0 : i32
    return %arg1, %arg0 : i32, i32
  }
}

</mosaic_0001>

<llo_original>
// kernel: tpu_custom_call.1
$region0: #{tpu_custom_call.1}
  #allocation0 [shape = 'u32[]', space=smem, size = 0x4, offset = 0x4, fixed_abs, tag = 'smem constant byte address 0x4 - core index']
  #allocation1 [shape = 'u32[144,128]{1,0:T(1,128)}', space=vmem, size = 0x12000, scoped, tag = 'internal scratch']
  %s0 = inlined_call_operand.hbm [shape: f32[2,256], index: 0, kind: input, shape index: {}]
  %s1 = inlined_call_operand.hbm [shape: f32[1,256], index: 1, kind: input, shape index: {}]
  %s2 = inlined_call_operand.hbm [shape: f32[2,256], index: 2, kind: output, shape index: {}]
  %s3 = sld [smem:[#allocation0]]
  $region26: #{tpu_custom_call.1} parent=0
    _
  %s5 = ssub.s32 1, %s3
  %s6 = scalar_select 0, %s5, %s3
  $region1: #{tpu_custom_call.1} parent=0
    #allocation2 [shape = 'u8[2048]{0}', space=vmem, size = 0x800, scoped, tag = 'input window, operand 0, single buffered']
    #allocation3 [shape = 's32[1]{0}', space=sflag, size = 0x4, scoped, tag = 'scoped memory for tpu_custom_call.1']
    #allocation4 [shape = 's32[1]{0}', space=sflag, size = 0x4, scoped, tag = 'scoped memory for tpu_custom_call.1']
    #allocation5 [shape = 'u8[1024]{0}', space=vmem, size = 0x400, scoped, tag = 'input window, operand 1, single buffered']
    #allocation6 [shape = 's32[1]{0}', space=sflag, size = 0x4, scoped, tag = 'scoped memory for tpu_custom_call.1']
    #allocation7 [shape = 'u8[2048]{0}', space=vmem, size = 0x800, scoped, tag = 'output window, operand 0, single buffered']
    %7 = vsyncpa [#allocation3], 0
    %8 = vsyncpa [#allocation6], 0
    %9 = vsyncpa [#allocation4], 0
    // Predicated region
    $region2: #{tpu_custom_call.1} parent=1 // pred_check
      _
    $region3: #{tpu_custom_call.1} parent=1 // pred_check_branch
      %11 = sbr.rel (0) target = $region5
    $region4: #{tpu_custom_call.1} parent=1 // pred_region
      %s13 = ssub.s32 64, 64
      %14 = vsyncadd [#allocation3], %s13
      %s16 = sshll.u32 [#allocation2], 4
      %s17 = int_to_ptr.vmem [resolvable:$true] %s16
      %19 = dma.hbm_to_vmem [thread:$0]  %s0, 64, %s17, [#allocation3]
    $region5: #{tpu_custom_call.1} parent=1 // pred_fallthru
      _
    // Predicated region
    $region6: #{tpu_custom_call.1} parent=1 // pred_check
      _
    $region7: #{tpu_custom_call.1} parent=1 // pred_check_branch
      %21 = sbr.rel (0) target = $region9
    $region8: #{tpu_custom_call.1} parent=1 // pred_region
      %s23 = ssub.s32 32, 32
      %24 = vsyncadd [#allocation6], %s23
      %s26 = sshll.u32 [#allocation5], 4
      %s27 = int_to_ptr.vmem [resolvable:$true] %s26
      %29 = dma.hbm_to_vmem [thread:$0]  %s1, 32, %s27, [#allocation6]
    $region9: #{tpu_custom_call.1} parent=1 // pred_fallthru
      _
    // Predicated region
    $region10: #{tpu_custom_call.1} parent=1 // pred_check
      _
    $region11: #{tpu_custom_call.1} parent=1 // pred_check_branch
      %31 = sbr.rel (0) target = $region13
    $region12: #{tpu_custom_call.1} parent=1 // pred_region
      %32 = dma.done [#allocation3], 64
    $region13: #{tpu_custom_call.1} parent=1 // pred_fallthru
      _
    // Predicated region
    $region14: #{tpu_custom_call.1} parent=1 // pred_check
      _
    $region15: #{tpu_custom_call.1} parent=1 // pred_check_branch
      %34 = sbr.rel (0) target = $region17
    $region16: #{tpu_custom_call.1} parent=1 // pred_region
      %35 = dma.done [#allocation6], 32
    $region17: #{tpu_custom_call.1} parent=1 // pred_fallthru
      _
    %v36 = vld [vmem:[#allocation2] sm:$0xf]
    %v37 = vld [vmem:[#allocation5] sm:$0x3]
    %v39 = vlaneseq
    %v40 = vshrl.u32 %v39, 7
    %v41 = vsub.s32 0, %v40
    %v42 = vrot.slane %v37, %v41
    %v43 = vlaneseq
    %v44 = vshrl.u32 %v43, 7
    %v45 = vsub.s32 1, %v44
    %v46 = vrot.slane %v37, %v45
    %v47 = vcombine.low %v42, %v46
    %v49 = vunpack.c.l.s4 1983009808
    %v50 = vunpack.c.0.s8 %v49
    %v51 = vlaneseq
    %v52 = vshrl.u32 %v51, 7
    %v53 = vsub.s32 %v50, %v52
    %v54 = vrot.slane %v47, %v53
    %v56 = vadd.f32 %v36, %v54
    %57 = vst [vmem:[#allocation7] sm:$0xf] %v56
    // Predicated region
    $region18: #{tpu_custom_call.1} parent=1 // pred_check
      _
    $region19: #{tpu_custom_call.1} parent=1 // pred_check_branch
      %59 = sbr.rel (0) target = $region21
    $region20: #{tpu_custom_call.1} parent=1 // pred_region
      %s61 = ssub.s32 64, 64
      %62 = vsyncadd [#allocation4], %s61
      %s64 = sshll.u32 [#allocation7], 4
      %s65 = int_to_ptr.vmem [resolvable:$true] %s64
      %67 = dma.vmem_to_hbm [thread:$0]  %s65, 64, %s2, [#allocation4]
    $region21: #{tpu_custom_call.1} parent=1 // pred_fallthru
      _
    // Predicated region
    $region22: #{tpu_custom_call.1} parent=1 // pred_check
      _
    $region23: #{tpu_custom_call.1} parent=1 // pred_check_branch
      %69 = sbr.rel (0) target = $region25
    $region24: #{tpu_custom_call.1} parent=1 // pred_region
      %70 = dma.done [#allocation4], 64
    $region25: #{tpu_custom_call.1} parent=1 // pred_fallthru
      _
    %71 = vsyncpa [#allocation3], 1
    %72 = vsyncpa [#allocation6], 1
    %73 = vsyncpa [#allocation4], 1

</llo_original>
